<compile_context>
chip_gen: v5e
topology: v5e:2x2
jax: 0.10.0
libtpu: 0.0.40
codegen_flags: <defaults>
</compile_context>

<pallas_src>
import jax
import jax.numpy as jnp
from jax import lax
from jax.experimental import pallas as pl
from jax.experimental.pallas import tpu as pltpu


# Below this many rows a single tile is used even on v7x (per-step overhead
# would dominate any 2-TensorCore win).
_MIN_ROWS_PER_CORE = 128


def _memory_unit2_kernel(te_ref, m_ref, b_ref, arr_ref, out_ref):
    """One batch-tile of MemoryUnit2.

    te_ref  : (TB, E)   task embeddings (native dtype)
    m_ref   : (E, K)    fused weight  M = arr.T @ (W / doc_norm).T
    b_ref   : (1, K)    fc bias (f32)
    arr_ref : (K, E)    memory array (native dtype)
    out_ref : (TB, 2E)  concat([task_embed, value], axis=1)
    """
    te_in = te_ref[...]                              # (TB, E) native dtype
    te = te_in.astype(jnp.float32)
    E = te.shape[1]

    # ---- fused cosine-similarity + fc:  fc = (te @ M) * inv_q + b ----
    # reference's sum(x*x + 1e-5) == sum(x*x) + E*1e-5 ; 1/doc_norm and arr.T
    # are folded into M in the wrapper.
    q_norm_sq = jnp.sum(te * te, axis=1, keepdims=True) + E * 1e-5   # (TB, 1)
    inv_q = lax.rsqrt(q_norm_sq)                                     # EUP

    tm = jnp.dot(te, m_ref[...].astype(jnp.float32),
                 preferred_element_type=jnp.float32)                 # (TB, K)
    fc = tm * inv_q + b_ref[...].astype(jnp.float32)                 # (TB, K)
    fc = jnp.maximum(fc, 0.0)                                        # relu

    # ---- softmax over the K memory slots ----
    mx = jnp.max(fc, axis=1, keepdims=True)
    e = jnp.exp(fc - mx)
    denom = jnp.sum(e, axis=1, keepdims=True)
    atten = e * pl.reciprocal(denom, approx=True)                    # (TB, K)

    # ---- value = atten @ array ----
    value = jnp.dot(atten, arr_ref[...].astype(jnp.float32),
                    preferred_element_type=jnp.float32)              # (TB, E)

    # ---- emit concat([task_embed, value], axis=1) directly ----
    out_ref[:, 0:E] = te_in.astype(out_ref.dtype)
    out_ref[:, E:2 * E] = value.astype(out_ref.dtype)


def prepare_memory_unit2_params(array, fc_w, fc_b):
    """One-time parameter preprocessing (do this at module init, not per call).

    array : (K, E) memory parameter
    fc_w  : (K, K) torch Linear weight (out, in)
    fc_b  : (K,)   torch Linear bias
    returns (M, bias, array) with M = arr.T @ (W / doc_norm).T, shape (E, K).
    """
    E = array.shape[1]
    arr_f32 = array.astype(jnp.float32)
    inv_d = lax.rsqrt(jnp.sum(arr_f32 * arr_f32, axis=1) + E * 1e-5)   # (K,) 1/doc_norm
    w_scaled = fc_w.astype(jnp.float32) * inv_d[None, :]               # fold norm into in-axis
    m = arr_f32.T @ w_scaled.T                                         # (E, K) fused weight
    bias = fc_b.astype(jnp.float32).reshape(1, -1)                     # (1, K)
    return m.astype(array.dtype), bias, array


def memory_unit2_apply(task_embed, m, bias, array, *, block_b=1024):
    """Batched MemoryUnit2 forward from precomputed params.

    task_embed: (B, E)   (B == 1 is the original module call)
    returns   : (B, 2E)  concat([task_embed, value], axis=1) per row
    """
    B, E = task_embed.shape
    K = array.shape[0]
    out_dtype = task_embed.dtype

    # --- batch tiling ---
    tb = int(min(block_b, B))
    if B > tb:
        tb = ((tb + 7) // 8) * 8               # sublane-aligned tiles when gridded
    elif B >= 2 * _MIN_ROWS_PER_CORE:
        # Large single-tile call: split into >=2 "parallel" tiles so Mosaic can
        # shard the batch axis across both TensorCores on v7x.
        tb = ((pl.cdiv(B, 2) + 7) // 8) * 8
    num_tiles = pl.cdiv(B, tb)
    bp = num_tiles * tb
    te_in = task_embed if bp == B else jnp.pad(task_embed, ((0, bp - B), (0, 0)))
    # Padded rows see te == 0 -> softmax(relu(bias)); eps keeps inv_q finite so
    # there is no NaN/Inf, and the rows are sliced off below.  Do not "fix".

    out_shape = jax.ShapeDtypeStruct((bp, 2 * E), out_dtype)

    if num_tiles == 1:
        # Single tile: no grid, whole arrays resident in VMEM, no pipeline scaffolding.
        out = pl.pallas_call(
            _memory_unit2_kernel,
            out_shape=out_shape,
        )(te_in, m, bias, array)
    else:
        out = pl.pallas_call(
            _memory_unit2_kernel,
            out_shape=out_shape,
            grid=(num_tiles,),
            in_specs=[
                pl.BlockSpec((tb, E), lambda i: (i, 0)),
                pl.BlockSpec((E, K), lambda i: (0, 0)),       # constant block
                pl.BlockSpec((1, K), lambda i: (0, 0)),       # constant block
                pl.BlockSpec((K, E), lambda i: (0, 0)),       # constant block
            ],
            out_specs=pl.BlockSpec((tb, 2 * E), lambda i: (i, 0)),
            compiler_params=pltpu.CompilerParams(
                dimension_semantics=("parallel",)),
        )(te_in, m, bias, array)

    return out[:B]


def memory_unit2(task_embed, array, fc_w, fc_b, *, block_b=1024):
    """Convenience wrapper: preprocess params (constant-folds under jit) and apply."""
    m, bias, arr = prepare_memory_unit2_params(array, fc_w, fc_b)
    return memory_unit2_apply(task_embed, m, bias, arr, block_b=block_b)


def ref_forward(task_embed, array, fc_w, fc_b):
    """Pure-JAX reference mirroring the PyTorch semantics, row-wise."""
    q_norm = jnp.sqrt(jnp.sum(task_embed ** 2 + 1e-5, axis=1, keepdims=True))   # (B, 1)
    d_norm = jnp.sqrt(jnp.sum(array ** 2 + 1e-5, axis=1))                        # (K,)
    prod = task_embed @ array.T                                                  # (B, K)
    cos = prod / (q_norm * d_norm[None, :])
    fc = jax.nn.relu(cos @ fc_w.T + fc_b[None, :])
    atten = jax.nn.softmax(fc, axis=-1)
    value = atten @ array
    return jnp.concatenate([task_embed, value], axis=1)


if __name__ == "__main__":
    clusters_k = 8    # K (n_k of the Attention head)
    emb_size = 32     # E
    batch = 16        # rows processed per call (each row == one module forward)

    key = jax.random.PRNGKey(0)
    k_arr, k_w, k_b, k_te = jax.random.split(key, 4)

    # nn.Parameter with xavier_uniform_ init: limit = sqrt(6 / (K + E))
    xavier = (6.0 / (clusters_k + emb_size)) ** 0.5
    array = jax.random.uniform(k_arr, (clusters_k, emb_size), jnp.float32,
                               minval=-xavier, maxval=xavier)
    # nn.Linear(n_k, n_k) default init: U(-1/sqrt(fan_in), 1/sqrt(fan_in))
    bound = 1.0 / (clusters_k ** 0.5)
    fc_w = jax.random.uniform(k_w, (clusters_k, clusters_k), jnp.float32,
                              minval=-bound, maxval=bound)
    fc_b = jax.random.uniform(k_b, (clusters_k,), jnp.float32,
                              minval=-bound, maxval=bound)

    task_embed = jax.random.normal(k_te, (batch, emb_size), jnp.float32)

    ref = ref_forward(task_embed, array, fc_w, fc_b)

    # Parameters preprocessed once (module-init time), reused for every forward.
    m_fused, bias, arr = prepare_memory_unit2_params(array, fc_w, fc_b)

    # Gridded path: small block_b forces multiple batch tiles ("parallel" grid axis).
    out_b = jax.block_until_ready(
        memory_unit2_apply(task_embed, m_fused, bias, arr, block_b=8))
    assert out_b.shape == (batch, 2 * emb_size)
    # Tolerance loosened (rsqrt / approx reciprocal / fused-weight fp association).
    assert jnp.allclose(out_b, ref, atol=5e-3, rtol=5e-3), "gridded mismatch vs reference"

    # Default (no-grid, single-tile) path over the whole batch.
    out_d = jax.block_until_ready(
        memory_unit2_apply(task_embed, m_fused, bias, arr))
    assert out_d.shape == (batch, 2 * emb_size)
    assert jnp.allclose(out_d, ref, atol=5e-3, rtol=5e-3), "single-tile mismatch vs reference"

    # Original module shape: a single (1, E) task_embed.
    out_1 = jax.block_until_ready(memory_unit2(task_embed[:1], array, fc_w, fc_b))
    assert out_1.shape == (1, 2 * emb_size)
    assert jnp.allclose(out_1, ref[:1], atol=5e-3, rtol=5e-3), "single-row mismatch vs reference"

    print("KERNEL_OK")
</pallas_src>

<mosaic_0001>
module attributes {stable_mosaic.version = 11 : i64} {
  func.func @_memory_unit2_kernel(%arg0: i32, %arg1: memref<8x32xf32, #tpu.memory_space<vmem>>, %arg2: memref<32x8xf32, #tpu.memory_space<vmem>>, %arg3: memref<1x8xf32, #tpu.memory_space<vmem>>, %arg4: memref<8x32xf32, #tpu.memory_space<vmem>>, %arg5: memref<8x64xf32, #tpu.memory_space<vmem>>) attributes {dimension_semantics = [#tpu.dimension_semantics<parallel>], iteration_bounds = array<i64: 2>, scalar_prefetch = 0 : i64, scratch_operands = 0 : i64, tpu.core_type = #tpu.core_type<tc>, window_params = [{transform_indices = @transform_0, window_bounds = array<i64: 8, 32>}, {pipeline_mode = #tpu.pipeline_mode<synchronous>, transform_indices = @transform_1, window_bounds = array<i64: 32, 8>}, {pipeline_mode = #tpu.pipeline_mode<synchronous>, transform_indices = @transform_2, window_bounds = array<i64: 1, 8>}, {pipeline_mode = #tpu.pipeline_mode<synchronous>, transform_indices = @transform_3, window_bounds = array<i64: 8, 32>}, {transform_indices = @transform_4, window_bounds = array<i64: 8, 64>}]} {
    %c0 = arith.constant 0 : index
    %c0_0 = arith.constant 0 : index
    %0 = vector.load %arg1[%c0, %c0_0] : memref<8x32xf32, #tpu.memory_space<vmem>>, vector<8x32xf32>
    %1 = arith.mulf %0, %0 : vector<8x32xf32>
    %cst = arith.constant dense<0.000000e+00> : vector<8xf32>
    %2 = vector.multi_reduction <add>, %1, %cst [1] : vector<8x32xf32> to vector<8xf32>
    %3 = vector.shape_cast %2 : vector<8xf32> to vector<8x1xf32>
    %cst_1 = arith.constant 3.200000e-04 : f32
    %4 = vector.broadcast %cst_1 : f32 to vector<8x1xf32>
    %5 = arith.addf %3, %4 : vector<8x1xf32>
    %6 = math.rsqrt %5 : vector<8x1xf32>
    %c0_2 = arith.constant 0 : index
    %c0_3 = arith.constant 0 : index
    %7 = vector.load %arg2[%c0_2, %c0_3] : memref<32x8xf32, #tpu.memory_space<vmem>>, vector<32x8xf32>
    %cst_4 = arith.constant dense<0.000000e+00> : vector<8x8xf32>
    %8 = tpu.matmul %0, %7, %cst_4 {dimension_numbers = #tpu.dot_dimension_numbers<[1], [0], [0], [1], [0, 0, 1, 1], [], []>} : vector<8x32xf32>, vector<32x8xf32>, vector<8x8xf32> -> vector<8x8xf32>
    %9 = vector.broadcast %6 : vector<8x1xf32> to vector<8x8xf32>
    %10 = arith.mulf %8, %9 : vector<8x8xf32>
    %c0_5 = arith.constant 0 : index
    %c0_6 = arith.constant 0 : index
    %11 = vector.load %arg3[%c0_5, %c0_6] : memref<1x8xf32, #tpu.memory_space<vmem>>, vector<1x8xf32>
    %12 = vector.broadcast %11 : vector<1x8xf32> to vector<8x8xf32>
    %13 = arith.addf %10, %12 : vector<8x8xf32>
    %cst_7 = arith.constant 0.000000e+00 : f32
    %14 = vector.broadcast %cst_7 : f32 to vector<8x8xf32>
    %15 = arith.maximumf %13, %14 : vector<8x8xf32>
    %cst_8 = arith.constant dense<0xFF800000> : vector<8xf32>
    %16 = vector.multi_reduction <maximumf>, %15, %cst_8 [1] : vector<8x8xf32> to vector<8xf32>
    %17 = vector.shape_cast %16 : vector<8xf32> to vector<8x1xf32>
    %18 = vector.broadcast %17 : vector<8x1xf32> to vector<8x8xf32>
    %19 = arith.subf %15, %18 : vector<8x8xf32>
    %20 = math.exp %19 : vector<8x8xf32>
    %cst_9 = arith.constant dense<0.000000e+00> : vector<8xf32>
    %21 = vector.multi_reduction <add>, %20, %cst_9 [1] : vector<8x8xf32> to vector<8xf32>
    %22 = vector.shape_cast %21 : vector<8xf32> to vector<8x1xf32>
    %23 = tpu.reciprocal %22 {approx = true} : vector<8x1xf32> -> vector<8x1xf32>
    %24 = vector.broadcast %23 : vector<8x1xf32> to vector<8x8xf32>
    %25 = arith.mulf %20, %24 : vector<8x8xf32>
    %c0_10 = arith.constant 0 : index
    %c0_11 = arith.constant 0 : index
    %26 = vector.load %arg4[%c0_10, %c0_11] : memref<8x32xf32, #tpu.memory_space<vmem>>, vector<8x32xf32>
    %cst_12 = arith.constant dense<0.000000e+00> : vector<8x32xf32>
    %27 = tpu.matmul %25, %26, %cst_12 {dimension_numbers = #tpu.dot_dimension_numbers<[1], [0], [0], [1], [0, 0, 1, 1], [], []>} : vector<8x8xf32>, vector<8x32xf32>, vector<8x32xf32> -> vector<8x32xf32>
    %c0_13 = arith.constant 0 : index
    %c0_14 = arith.constant 0 : index
    %28 = vector.load %arg5[%c0_13, %c0_14] : memref<8x64xf32, #tpu.memory_space<vmem>>, vector<8x32xf32>
    tpu.vector_store %arg5[%c0_13, %c0_14], %0 {strides = array<i32>} : memref<8x64xf32, #tpu.memory_space<vmem>>, vector<8x32xf32>,
    %c0_15 = arith.constant 0 : index
    %c32 = arith.constant 32 : index
    %29 = vector.load %arg5[%c0_15, %c32] : memref<8x64xf32, #tpu.memory_space<vmem>>, vector<8x32xf32>
    tpu.vector_store %arg5[%c0_15, %c32], %27 {strides = array<i32>} : memref<8x64xf32, #tpu.memory_space<vmem>>, vector<8x32xf32>,
    return
  }
  func.func @transform_0(%arg0: i32) -> (i32, i32) {
    %c0_i32 = arith.constant 0 : i32
    %c0_i32_0 = arith.constant 0 : i32
    return %arg0, %c0_i32 : i32, i32
  }
  func.func @transform_1(%arg0: i32) -> (i32, i32) {
    %c0_i32 = arith.constant 0 : i32
    %c0_i32_0 = arith.constant 0 : i32
    %c0_i32_1 = arith.constant 0 : i32
    return %c0_i32, %c0_i32_0 : i32, i32
  }
  func.func @transform_2(%arg0: i32) -> (i32, i32) {
    %c0_i32 = arith.constant 0 : i32
    %c0_i32_0 = arith.constant 0 : i32
    %c0_i32_1 = arith.constant 0 : i32
    return %c0_i32, %c0_i32_0 : i32, i32
  }
  func.func @transform_3(%arg0: i32) -> (i32, i32) {
    %c0_i32 = arith.constant 0 : i32
    %c0_i32_0 = arith.constant 0 : i32
    %c0_i32_1 = arith.constant 0 : i32
    return %c0_i32, %c0_i32_0 : i32, i32
  }
  func.func @transform_4(%arg0: i32) -> (i32, i32) {
    %c0_i32 = arith.constant 0 : i32
    %c0_i32_0 = arith.constant 0 : i32
    return %arg0, %c0_i32 : i32, i32
  }
}

</mosaic_0001>

<llo_original>
// kernel: tpu_custom_call.1
$region0: #{tpu_custom_call.1}
  #allocation0 [shape = 'u32[]', space=smem, size = 0x4, offset = 0x4, fixed_abs, tag = 'smem constant byte address 0x4 - core index']
  #allocation1 [shape = 'u32[72,128]{1,0:T(1,128)}', space=vmem, size = 0x9000, scoped, tag = 'internal scratch']
  %s0 = inlined_call_operand.vmem [shape: f32[16,32], index: 0, kind: input, shape index: {}]
  %s1 = inlined_call_operand.vmem [shape: f32[32,8], index: 1, kind: input, shape index: {}]
  %s2 = inlined_call_operand.vmem [shape: f32[1,8], index: 2, kind: input, shape index: {}]
  %s3 = inlined_call_operand.vmem [shape: f32[8,32], index: 3, kind: input, shape index: {}]
  %s4 = inlined_call_operand.hbm [shape: f32[16,64], index: 4, kind: output, shape index: {}]
  %s5 = sld [smem:[#allocation0]]
  $region49: #{tpu_custom_call.1} parent=0
    _
  %s7 = ssub.s32 1, %s5
  %s8 = scalar_select 0, %s7, %s5
  $region1: #{tpu_custom_call.1} parent=0
    #allocation2 [shape = 'u8[8192]{0}', space=vmem, size = 0x2000, scoped, tag = 'output window, operand 0']
    #allocation3 [shape = 's32[2]{0}', space=sflag, size = 0x8, scoped, tag = 'scoped memory for tpu_custom_call.1']
    %9 = vsyncpa [#allocation3], 0
    %s10 = scalar_lea.sflag [#allocation3], 1
    %11 = vsyncpa %s10, 0
    loop: start=0, step=1, limit=4
    $region2: #{tpu_custom_call.1} parent=1 // loop_pre_header
      _
    $region3: #{tpu_custom_call.1} parent=1 // loop_header
      %s13 = sphi 0, %s17
      %p14 = scmp.ge.s32.totalorder %s13, 4
      %s23 = sphi 0, %s25
      %s26 = sphi 0, %s23
      %s27 = sphi 0, %s26
      %s43 = sphi 0, %s27
      %s47 = sphi 0, %s47
      %s49 = sphi 0, %s47
      %s50 = sphi 0, %s49
      %s64 = sphi 0, %s50
      %s68 = sphi 0, %s68
      %s70 = sphi 0, %s68
      %s71 = sphi 0, %s70
      %s85 = sphi 0, %s71
      %s89 = sphi 0, %s89
      %s91 = sphi 0, %s89
      %s92 = sphi 0, %s91
      %s106 = sphi 0, %s92
      %s112 = sphi 0, %s114
      %s115 = sphi 0, %s112
      %s116 = sphi 0, %s115
      %s132 = sphi 0, %s116
    $region4: #{tpu_custom_call.1} parent=1 // loop_header_branch
      %16 = sbr.rel (%p14) target = $region8
    $region5: #{tpu_custom_call.1} parent=1 // loop_body
      %s18 = ssub.s32 %s13, 1
      %s19 = ssub.s32 %s13, 2
      %s20 = sadd.s32 %s13, 1
      %s21 = ssub.s32 %s13, %s20
      %p22 = scmp.eq.s32.totalorder %s21, 0
      %s24 = sadd.s32 %s23, 1
      %s25 = scalar_select %p22, %s23, %s24
      %p28 = pneg %p22
      %p29 = scmp.eq.s32.totalorder %s13, 1
      %p30 = por %p28, %p29
      %p31 = scmp.ne.s32.totalorder %s23, %s26
      %p32 = scmp.eq.s32.totalorder %s13, 0
      %p33 = por %p31, %p32
      %p34 = scmp.ne.s32.totalorder %s23, %s26
      %p35 = scmp.eq.s32.totalorder %s18, 1
      %p36 = por %p34, %p35
      %p37 = scmp.ne.s32.totalorder %s26, %s27
      %p38 = scmp.eq.s32.totalorder %s18, 0
      %p39 = por %p37, %p38
      %p40 = scmp.ne.s32.totalorder %s26, %s27
      %p41 = scmp.eq.s32.totalorder %s19, 1
      %p42 = por %p40, %p41
      %p44 = scmp.ne.s32.totalorder %s27, %s43
      %p45 = scmp.eq.s32.totalorder %s19, 0
      %p46 = por %p44, %p45
      %s48 = sadd.s32 %s47, 1
      %p51 = scmp.eq.s32.totalorder %s13, 1
      %p52 = scmp.ne.s32.totalorder %s47, %s49
      %p53 = scmp.eq.s32.totalorder %s13, 0
      %p54 = por %p52, %p53
      %p55 = scmp.ne.s32.totalorder %s47, %s49
      %p56 = scmp.eq.s32.totalorder %s18, 1
      %p57 = por %p55, %p56
      %p58 = scmp.ne.s32.totalorder %s49, %s50
      %p59 = scmp.eq.s32.totalorder %s18, 0
      %p60 = por %p58, %p59
      %p61 = scmp.ne.s32.totalorder %s49, %s50
      %p62 = scmp.eq.s32.totalorder %s19, 1
      %p63 = por %p61, %p62
      %p65 = scmp.ne.s32.totalorder %s50, %s64
      %p66 = scmp.eq.s32.totalorder %s19, 0
      %p67 = por %p65, %p66
      %s69 = sadd.s32 %s68, 1
      %p72 = scmp.eq.s32.totalorder %s13, 1
      %p73 = scmp.ne.s32.totalorder %s68, %s70
      %p74 = scmp.eq.s32.totalorder %s13, 0
      %p75 = por %p73, %p74
      %p76 = scmp.ne.s32.totalorder %s68, %s70
      %p77 = scmp.eq.s32.totalorder %s18, 1
      %p78 = por %p76, %p77
      %p79 = scmp.ne.s32.totalorder %s70, %s71
      %p80 = scmp.eq.s32.totalorder %s18, 0
      %p81 = por %p79, %p80
      %p82 = scmp.ne.s32.totalorder %s70, %s71
      %p83 = scmp.eq.s32.totalorder %s19, 1
      %p84 = por %p82, %p83
      %p86 = scmp.ne.s32.totalorder %s71, %s85
      %p87 = scmp.eq.s32.totalorder %s19, 0
      %p88 = por %p86, %p87
      %s90 = sadd.s32 %s89, 1
      %p93 = scmp.eq.s32.totalorder %s13, 1
      %p94 = scmp.ne.s32.totalorder %s89, %s91
      %p95 = scmp.eq.s32.totalorder %s13, 0
      %p96 = por %p94, %p95
      %p97 = scmp.ne.s32.totalorder %s89, %s91
      %p98 = scmp.eq.s32.totalorder %s18, 1
      %p99 = por %p97, %p98
      %p100 = scmp.ne.s32.totalorder %s91, %s92
      %p101 = scmp.eq.s32.totalorder %s18, 0
      %p102 = por %p100, %p101
      %p103 = scmp.ne.s32.totalorder %s91, %s92
      %p104 = scmp.eq.s32.totalorder %s19, 1
      %p105 = por %p103, %p104
      %p107 = scmp.ne.s32.totalorder %s92, %s106
      %p108 = scmp.eq.s32.totalorder %s19, 0
      %p109 = por %p107, %p108
      %s110 = ssub.s32 %s13, %s20
      %p111 = scmp.eq.s32.totalorder %s110, 0
      %s113 = sadd.s32 %s112, 1
      %s114 = scalar_select %p111, %s112, %s113
      %p117 = pneg %p111
      %p118 = scmp.eq.s32.totalorder %s13, 1
      %p119 = por %p117, %p118
      %p120 = scmp.ne.s32.totalorder %s112, %s115
      %p121 = scmp.eq.s32.totalorder %s13, 0
      %p122 = por %p120, %p121
      %p123 = scmp.ne.s32.totalorder %s112, %s115
      %p124 = scmp.eq.s32.totalorder %s18, 1
      %p125 = por %p123, %p124
      %p126 = scmp.ne.s32.totalorder %s115, %s116
      %p127 = scmp.eq.s32.totalorder %s18, 0
      %p128 = por %p126, %p127
      %p129 = scmp.ne.s32.totalorder %s115, %s116
      %p130 = scmp.eq.s32.totalorder %s19, 1
      %p131 = por %p129, %p130
      %p133 = scmp.ne.s32.totalorder %s116, %s132
      %p134 = scmp.eq.s32.totalorder %s19, 0
      %p135 = por %p133, %p134
      %p136 = scmp.le.s32.totalorder 1, %s13
      %p137 = scmp.lt.s32.totalorder %s13, 3
      %p138 = pnand %p136, %p137
      %p139 = pneg %p138
      // Predicated region
      $region9: #{tpu_custom_call.1} parent=5 // pred_check
        _
      $region10: #{tpu_custom_call.1} parent=5 // pred_check_branch
        %141 = sbr.rel (%p138) target = $region12
      $region11: #{tpu_custom_call.1} parent=5 // pred_region
        %s142 = ssub.s32 %s13, 1
        // Predicated region
        $region13: #{tpu_custom_call.1} parent=11 // pred_check
          %p143 = pneg %p60
        $region14: #{tpu_custom_call.1} parent=11 // pred_check_branch
          %145 = sbr.rel (%p143) target = $region16
        $region15: #{tpu_custom_call.1} parent=11 // pred_region
          _
        $region16: #{tpu_custom_call.1} parent=11 // pred_fallthru
          _
        // Predicated region
        $region17: #{tpu_custom_call.1} parent=11 // pred_check
          %p146 = pneg %p81
        $region18: #{tpu_custom_call.1} parent=11 // pred_check_branch
          %148 = sbr.rel (%p146) target = $region20
        $region19: #{tpu_custom_call.1} parent=11 // pred_region
          _
        $region20: #{tpu_custom_call.1} parent=11 // pred_fallthru
          _
        // Predicated region
        $region21: #{tpu_custom_call.1} parent=11 // pred_check
          %p149 = pneg %p102
        $region22: #{tpu_custom_call.1} parent=11 // pred_check_branch
          %151 = sbr.rel (%p149) target = $region24
        $region23: #{tpu_custom_call.1} parent=11 // pred_region
          _
        $region24: #{tpu_custom_call.1} parent=11 // pred_fallthru
          _
      $region12: #{tpu_custom_call.1} parent=5 // pred_fallthru
        _
      %p152 = scmp.lt.s32.totalorder %s13, 2
      // Predicated region
      $region25: #{tpu_custom_call.1} parent=5 // pred_check
        %p153 = pneg %p152
      $region26: #{tpu_custom_call.1} parent=5 // pred_check_branch
        %155 = sbr.rel (%p153) target = $region28
      $region27: #{tpu_custom_call.1} parent=5 // pred_region
        // Predicated region
        $region29: #{tpu_custom_call.1} parent=27 // pred_check
          %p156 = pneg %p33
        $region30: #{tpu_custom_call.1} parent=27 // pred_check_branch
          %158 = sbr.rel (%p156) target = $region32
        $region31: #{tpu_custom_call.1} parent=27 // pred_region
          %p159 = scmp.lt.s32.totalorder %s13, 1
          %s160 = scalar_select %p159, %s13, 1
          %s161 = smul.addr %s160, 8
          %s162 = scalar_lea.vmem %s0, %s161
        $region32: #{tpu_custom_call.1} parent=27 // pred_fallthru
          _
      $region28: #{tpu_custom_call.1} parent=5 // pred_fallthru
        _
      %p163 = scmp.le.s32.totalorder 1, %s13
      %p164 = scmp.lt.s32.totalorder %s13, 3
      %p165 = pnand %p163, %p164
      %p166 = pneg %p165
      // Predicated region
      $region33: #{tpu_custom_call.1} parent=5 // pred_check
        _
      $region34: #{tpu_custom_call.1} parent=5 // pred_check_branch
        %168 = sbr.rel (%p165) target = $region36
      $region35: #{tpu_custom_call.1} parent=5 // pred_region
        %s169 = ssub.s32 %s13, 1
        %p170 = scmp.lt.s32.totalorder %s18, 1
        %s171 = scalar_select %p170, %s18, 1
        %s172 = smul.addr %s171, 8
        %s173 = scalar_lea.vmem %s0, %s172
        %p174 = pneg %p39
        %p175 = pneg %p36
        %p176 = pneg %p60
        %p177 = pneg %p57
        %p178 = pneg %p81
        %p179 = pneg %p78
        %p180 = pneg %p102
        %p181 = pneg %p99
        %p182 = pneg %p128
        %p183 = pneg %p125
        %s184 = sand.u32 %s115, 1
        %s185 = scalar_lea.sflag [#allocation3], %s184
        %s186 = sand.u32 %s115, 1
        %s187 = smul.addr %s186, 8
        %s188 = scalar_lea.vmem [#allocation2], %s187
        %p189 = scmp.lt.s32.totalorder %s18, 1
        %s190 = scalar_select %p189, %s18, 1
        %s191 = smul.addr %s190, 8
        %s192 = scalar_lea.vmem %s0, %s191
        %v193 = vld [vmem:[%s192] sm:$0xff]
        %v194 = vmul.f32 %v193, %v193
        %vm195 = vcmask 261120
        %v196 = vsel %vm195, %v194, 0.0
        %197 = vadd.xlane.f32.xlu0 %v196
        %v198 = vpop.xlane.xlu0 %197
        %v199 = vadd.f32 %v198, 0.00032
        %v200 = vrsqrt.pop %v199
        %v201 = vmul.f32 %v200, %v199
        %v202 = vmul.f32 %v201, %v200
        %v203 = vmul.f32 0.5, %v202
        %v204 = vsub.f32 1.5, %v203
        %v205 = vmul.f32 %v200, %v204
        %vm206 = vweird.f32 %v199
        %vm207 = vweird.f32 %v200
        %vm208 = vmor %vm206, %vm207
        %v209 = vsel %vm208, %v200, %v205
        %v210 = vld [vmem:[%s1] sm:$0xff]
        %v211 = vld [vmem:[%s1 + $0x8] sm:$0xff]
        %v212 = vld [vmem:[%s1 + $0x10] sm:$0xff]
        %v213 = vld [vmem:[%s1 + $0x18] sm:$0xff]
        %v215 = vsel %vm195, %v193, 0
        %217 = vmatpush.msra.mxu0 0.0
        %218 = vmatpush.msra.mxu0 0.0
        %219 = vmatpush.msra.mxu0 0.0
        %220 = vmatpush.msra.mxu0 0.0
        %221 = vmatpush.msra.mxu0 0.0
        %222 = vmatpush.msra.mxu0 0.0
        %223 = vmatpush.msra.mxu0 0.0
        %224 = vmatpush.msra.mxu0 0.0
        %225 = vmatpush.msra.mxu0 0.0
        %226 = vmatpush.msra.mxu0 0.0
        %227 = vmatpush.msra.mxu0 0.0
        %228 = vmatpush.msra.mxu0 0.0
        %229 = vmatpush.msra.mxu0 %v213
        %230 = vmatpush.msra.mxu0 %v212
        %231 = vmatpush.msra.mxu0 %v211
        %232 = vmatpush.msra.mxu0 %v210
        %233 = vmatmul.f32.gmra.mxu0 %v215
        %v234 = vpop.f32.mrf.mxu0
        %v235 = vadd.f32 0.0, %v234
        %236 = vdwg.mxu0
        %v237 = vmul.f32 %v235, %v209
        %v238 = vld [vmem:[%s2] sm:$0x1]
        %v240 = vperm.slane %v238, 0
        %v242 = vadd.f32 %v237, %v240
        %v243 = vmax.f32 %v242, 0.0
        %vm244 = vcmask 64512
        %v245 = vsel %vm244, %v243, -inf
        %246 = vmax.xlane.f32.xlu0 %v245
        %v247 = vpop.xlane.xlu0 %246
        %v248 = vsub.f32 %v243, %v247
        %v249 = vmul.f32 %v248, 1.442695
        %v250 = vpow.pop %v249
        %v251 = vsel %vm244, %v250, 0.0
        %252 = vadd.xlane.f32.xlu0 %v251
        %v253 = vpop.xlane.xlu0 %252
        %v254 = vrcp.pop %v253
        %v255 = vmul.f32 %v250, %v254
        %v256 = vld [vmem:[%s3] sm:$0xff]
        %v258 = vsel %vm244, %v255, 0
        %260 = vmatpush.msra.mxu0 0.0
        %261 = vmatpush.msra.mxu0 0.0
        %262 = vmatpush.msra.mxu0 0.0
        %263 = vmatpush.msra.mxu0 0.0
        %264 = vmatpush.msra.mxu0 0.0
        %265 = vmatpush.msra.mxu0 0.0
        %266 = vmatpush.msra.mxu0 0.0
        %267 = vmatpush.msra.mxu0 0.0
        %268 = vmatpush.msra.mxu0 0.0
        %269 = vmatpush.msra.mxu0 0.0
        %270 = vmatpush.msra.mxu0 0.0
        %271 = vmatpush.msra.mxu0 0.0
        %272 = vmatpush.msra.mxu0 0.0
        %273 = vmatpush.msra.mxu0 0.0
        %274 = vmatpush.msra.mxu0 0.0
        %275 = vmatpush.msra.mxu0 %v256
        %276 = vmatmul.f32.gmra.mxu0 %v258
        %v277 = vpop.f32.mrf.mxu0
        %v278 = vadd.f32 0.0, %v277
        %279 = vdwg.mxu0
        %280 = vst.msk [vmem:[%s188] sm:$0xff] %vm195, %v193
        %282 = vrot.lane.b32.xlu0 %v278, 32
        %v283 = vpop.permute.xlu0 %282
        %vm285 = vcmask 523520
        %286 = vst.msk [vmem:[%s188] sm:$0xff] %vm285, %v283
        %s287 = sand.u32 %s115, 1
        %s288 = scalar_lea.sflag [#allocation3], %s287
        %s289 = sand.u32 %s115, 1
        %s290 = smul.addr %s289, 8
        %s291 = scalar_lea.vmem [#allocation2], %s290
        // Predicated region
        $region37: #{tpu_custom_call.1} parent=35 // pred_check
          %p292 = pneg %p125
        $region38: #{tpu_custom_call.1} parent=35 // pred_check_branch
          %294 = sbr.rel (%p292) target = $region40
        $region39: #{tpu_custom_call.1} parent=35 // pred_region
          %296 = vsyncadd %s288, 0
          %s297 = smul.addr %s18, 8
          %s298 = scalar_lea.hbm %s4, %s297
          %s300 = sshll.u32 %s291, 4
          %s301 = int_to_ptr.vmem [resolvable:$true] %s300
          %s302 = sshll.u32 %s298, 4
          %s303 = int_to_ptr.hbm [resolvable:$true] %s302
          %305 = dma.vmem_to_hbm [thread:$0]  %s301, 128, %s303, %s288
        $region40: #{tpu_custom_call.1} parent=35 // pred_fallthru
          _
      $region36: #{tpu_custom_call.1} parent=5 // pred_fallthru
        _
      %p306 = scmp.le.s32.totalorder 2, %s13
      // Predicated region
      $region41: #{tpu_custom_call.1} parent=5 // pred_check
        %p307 = pneg %p306
      $region42: #{tpu_custom_call.1} parent=5 // pred_check_branch
        %309 = sbr.rel (%p307) target = $region44
      $region43: #{tpu_custom_call.1} parent=5 // pred_region
        %s310 = ssub.s32 %s13, 2
        // Predicated region
        $region45: #{tpu_custom_call.1} parent=43 // pred_check
          %p311 = pneg %p131
        $region46: #{tpu_custom_call.1} parent=43 // pred_check_branch
          %313 = sbr.rel (%p311) target = $region48
        $region47: #{tpu_custom_call.1} parent=43 // pred_region
          %s314 = sand.u32 %s116, 1
          %s315 = scalar_lea.sflag [#allocation3], %s314
          %s316 = sand.u32 %s116, 1
          %s317 = smul.addr %s316, 8
          %s318 = scalar_lea.vmem [#allocation2], %s317
          %320 = dma.done %s315, 128
        $region48: #{tpu_custom_call.1} parent=43 // pred_fallthru
          _
      $region44: #{tpu_custom_call.1} parent=5 // pred_fallthru
        _
    $region6: #{tpu_custom_call.1} parent=1 // loop_footer
      %s17 = sadd.s32 1, %s13
    $region7: #{tpu_custom_call.1} parent=1 // loop_footer_branch
      %12 = sbr.rel target = $region3
    $region8: #{tpu_custom_call.1} parent=1 // loop_exit
      _
    %321 = vsyncpa [#allocation3], 1
    %s322 = scalar_lea.sflag [#allocation3], 1
    %323 = vsyncpa %s322, 1

</llo_original>
